<compile_context>
chip_gen: v7x
topology: tpu7x:2x2x1
jax: 0.10.0
libtpu: 0.0.40
codegen_flags: <defaults>
</compile_context>

<pallas_src>
import functools

import jax
import jax.numpy as jnp
from jax.experimental import pallas as pl
from jax.experimental.pallas import tpu as pltpu


def _round_up(x, m):
    return ((x + m - 1) // m) * m


def _vmem_capacity_bytes():
    """Best-effort VMEM capacity query; conservative (v7x) default on failure."""
    try:
        return int(pltpu.get_tpu_info().vmem_capacity_bytes)
    except Exception:  # noqa: BLE001 - any failure -> conservative default
        return 64 * 1024 * 1024


def _vmem_limit_bytes(need_bytes):
    # 2x headroom for compiler temporaries / layout padding; never request the whole
    # 64 MiB that v7x has per TensorCore.
    return int(min(48 * 1024 * 1024, max(16 * 1024 * 1024, 2 * need_bytes + (2 << 20))))


def _choose_tiles(B, D, C, tile_b, tile_c, tile_k, *, predict):
    cap = _vmem_capacity_bytes()
    big_vmem = cap >= 96 * 1024 * 1024  # v5e / v6e (128 MiB); v7x is 64 MiB
    if tile_k is None:
        tile_k = 2048
    if tile_c is None:
        tile_c = 1024 if (big_vmem and not predict and D >= 2048 and C >= 2048) else 512
    if tile_b is None:
        tile_b = 1024 if (big_vmem and predict and D >= 2048 and B >= 1024) else 512
    # Alignment: bf16 vreg packs [16,128] -> batch tile mult. of 16; class tile mult. of
    # 128 (lane-dense stores); K tile mult. of 256 (256x256 MXU on v6e/v7x).
    tile_b = _round_up(int(tile_b), 16)
    tile_c = _round_up(int(tile_c), 128)
    tile_k = _round_up(int(tile_k), 256)
    tb = min(tile_b, _round_up(B, 16))
    tc = min(tile_c, _round_up(C, 128))
    tk = min(tile_k, _round_up(D, 256))
    B_pad = _round_up(B, tb)
    C_pad = _round_up(C, tc)
    D_pad = _round_up(D, tk)
    return tb, tc, tk, B_pad, C_pad, D_pad


def _spec(shape, index_map, mode=None):
    if mode is None:
        return pl.BlockSpec(shape, index_map)
    return pl.BlockSpec(shape, index_map, pipeline_mode=mode)


def _pad2(a, r, c):
    if r or c:
        return jnp.pad(a, ((0, r), (0, c)))
    return a


def prepare_head_params(weight, bias, *, mxu_dtype=jnp.bfloat16):
    """Optional: pre-cast parameters once so the per-call wrapper cast is skipped."""
    return weight.astype(mxu_dtype), bias.reshape(1, -1).astype(jnp.float32)


# --------------------------- forward: logits = x @ W + b ---------------------------

def _linear_head_kernel(x_ref, w_ref, b_ref, o_ref, acc_ref):
    # x_ref: (tb, tk) bf16   w_ref: (tk, tc) bf16   b_ref: (1, tc) f32
    # o_ref: (tb, tc) out_dtype   acc_ref: (tb, tc) f32 (resident across the K axis)
    k = pl.program_id(2)

    @pl.when(k == 0)
    def _():
        acc_ref[...] = jnp.zeros_like(acc_ref)

    acc_ref[...] += jnp.dot(x_ref[...], w_ref[...], preferred_element_type=jnp.float32)

    @pl.when(k == pl.num_programs(2) - 1)
    def _():
        o_ref[...] = (acc_ref[...] + b_ref[...]).astype(o_ref.dtype)


@functools.partial(
    jax.jit, static_argnames=("tile_b", "tile_c", "tile_k", "mxu_dtype", "out_dtype")
)
def base_head_forward(features, weight, bias, *, tile_b=None, tile_c=None, tile_k=None,
                      mxu_dtype=jnp.bfloat16, out_dtype=jnp.float32):
    """Forward pass of the head: logits = features @ weight + bias."""
    B, D = features.shape
    Dw, C = weight.shape
    assert D == Dw, "input_dim mismatch"

    tb, tc, tk, B_pad, C_pad, D_pad = _choose_tiles(
        B, D, C, tile_b, tile_c, tile_k, predict=False)

    x = features if features.dtype == mxu_dtype else features.astype(mxu_dtype)
    w = weight if weight.dtype == mxu_dtype else weight.astype(mxu_dtype)
    b2 = bias.reshape(1, -1).astype(jnp.float32)
    x = _pad2(x, B_pad - B, D_pad - D)
    w = _pad2(w, D_pad - D, C_pad - C)
    b2 = _pad2(b2, 0, C_pad - b2.shape[1])

    nb, nc, nk = B_pad // tb, C_pad // tc, D_pad // tk
    in_bytes = jnp.dtype(mxu_dtype).itemsize
    out_bytes = jnp.dtype(out_dtype).itemsize

    # Grid-order selection: keep the weight resident (C outer) only if the redundant
    # re-reads of x are cheaper than the redundant re-reads of W would be.
    weight_resident = (nc - 1) * (B_pad * D_pad) <= (nb - 1) * (D_pad * C_pad)

    # Single-buffer the resident operand only when its block really is invariant along
    # the inner axes (nk == 1) and the inner trip count amortizes the exposed DMA.
    inner_trips = (nb if weight_resident else nc) * nk
    resident_mode = pl.Buffered(1) if (nk == 1 and inner_trips >= 4) else None

    if weight_resident:
        grid = (nc, nb, nk)
        x_spec = _spec((tb, tk), lambda j, i, k: (i, k))
        w_spec = _spec((tk, tc), lambda j, i, k: (k, j), resident_mode)
        b_spec = _spec((1, tc), lambda j, i, k: (0, j), resident_mode)
        o_spec = _spec((tb, tc), lambda j, i, k: (i, j))
        x_bufs, w_bufs = 2, (1 if resident_mode is not None else 2)
    else:
        grid = (nb, nc, nk)
        x_spec = _spec((tb, tk), lambda i, j, k: (i, k), resident_mode)
        w_spec = _spec((tk, tc), lambda i, j, k: (k, j))
        b_spec = _spec((1, tc), lambda i, j, k: (0, j))
        o_spec = _spec((tb, tc), lambda i, j, k: (i, j))
        x_bufs, w_bufs = (1 if resident_mode is not None else 2), 2

    need = (x_bufs * tb * tk * in_bytes + w_bufs * tk * tc * in_bytes
            + 2 * tc * 4 + 2 * tb * tc * out_bytes + tb * tc * 4)

    x_reads = nc if (nk > 1 or weight_resident) else 1
    w_reads = nb if (nk > 1 or not weight_resident) else 1
    cost = pl.CostEstimate(
        flops=int(2 * B_pad * D_pad * C_pad),
        transcendentals=0,
        bytes_accessed=int(x_reads * B_pad * D_pad * in_bytes
                           + w_reads * D_pad * C_pad * in_bytes
                           + C_pad * 4 + B_pad * C_pad * out_bytes),
    )

    logits_pad = pl.pallas_call(
        _linear_head_kernel,
        out_shape=jax.ShapeDtypeStruct((B_pad, C_pad), out_dtype),
        grid_spec=pltpu.PrefetchScalarGridSpec(
            num_scalar_prefetch=0,
            grid=grid,
            in_specs=[x_spec, w_spec, b_spec],
            out_specs=o_spec,
            scratch_shapes=[pltpu.VMEM((tb, tc), jnp.float32)],
        ),
        compiler_params=pltpu.CompilerParams(
            dimension_semantics=("parallel", "parallel", "arbitrary"),
            vmem_limit_bytes=_vmem_limit_bytes(need),
        ),
        cost_estimate=cost,
    )(x, w, b2)

    return logits_pad[:B, :C]


# ------------------ predict: fused matmul + bias + argmax over classes ------------------

def _argmax_head_kernel(x_ref, w_ref, b_ref, idx_ref, acc_sc, m_sc, a_sc,
                        *, num_classes, tile_c):
    # grid = (nb, nc, nk): batch outer (parallel), class tiles middle, K innermost.
    j = pl.program_id(1)
    k = pl.program_id(2)
    nc = pl.num_programs(1)
    nk = pl.num_programs(2)

    @pl.when(jnp.logical_and(j == 0, k == 0))
    def _():
        m_sc[...] = jnp.full_like(m_sc, -jnp.inf)
        a_sc[...] = jnp.zeros_like(a_sc)

    @pl.when(k == 0)
    def _():
        acc_sc[...] = jnp.zeros_like(acc_sc)

    acc_sc[...] += jnp.dot(x_ref[...], w_ref[...], preferred_element_type=jnp.float32)

    @pl.when(k == nk - 1)
    def _():
        s = acc_sc[...] + b_ref[...]
        # Global class index of every lane; mask out padded classes.
        col = j * tile_c + jax.lax.broadcasted_iota(jnp.int32, s.shape, 1)
        s = jnp.where(col < num_classes, s, -jnp.inf)

        loc_max = jnp.max(s, axis=-1, keepdims=True)                    # (tb, 1)
        big = jnp.int32(jnp.iinfo(jnp.int32).max)
        loc_arg = jnp.min(jnp.where(s == loc_max, col, big),            # first-max index
                          axis=-1, keepdims=True)                       # (tb, 1) int32

        better = loc_max > m_sc[...]                                    # strict > keeps earliest
        a_sc[...] = jnp.where(better, loc_arg, a_sc[...])
        m_sc[...] = jnp.where(better, loc_max, m_sc[...])

    @pl.when(jnp.logical_and(j == nc - 1, k == nk - 1))
    def _():
        idx_ref[...] = a_sc[...]


@functools.partial(
    jax.jit,
    static_argnames=("tile_b", "tile_c", "tile_k", "mxu_dtype", "multilabel"))
def base_head_predict(features, weight, bias, *, threshold=0.5, tile_b=None, tile_c=None,
                      tile_k=None, mxu_dtype=jnp.bfloat16, multilabel=False):
    """Mirrors BaseHead.predict.

    - multi-class (C > 1): fused matmul+argmax kernel, returns int32 class ids [B].
    - multi-label (multilabel=True): sigmoid(logits) > threshold (glue in plain JAX).
    - otherwise: raw logits.
    """
    B, D = features.shape
    Dw, C = weight.shape
    assert D == Dw, "input_dim mismatch"

    if multilabel:
        logits = base_head_forward(features, weight, bias, tile_b=tile_b, tile_c=tile_c,
                                   tile_k=tile_k, mxu_dtype=mxu_dtype)
        return (jax.nn.sigmoid(logits) > threshold).astype(jnp.float32)
    if C <= 1:
        return base_head_forward(features, weight, bias, tile_b=tile_b, tile_c=tile_c,
                                 tile_k=tile_k, mxu_dtype=mxu_dtype)

    tb, tc, tk, B_pad, C_pad, D_pad = _choose_tiles(
        B, D, C, tile_b, tile_c, tile_k, predict=True)

    x = features if features.dtype == mxu_dtype else features.astype(mxu_dtype)
    w = weight if weight.dtype == mxu_dtype else weight.astype(mxu_dtype)
    b2 = bias.reshape(1, -1).astype(jnp.float32)
    x = _pad2(x, B_pad - B, D_pad - D)
    w = _pad2(w, D_pad - D, C_pad - C)
    b2 = _pad2(b2, 0, C_pad - b2.shape[1])

    nb, nc, nk = B_pad // tb, C_pad // tc, D_pad // tk
    in_bytes = jnp.dtype(mxu_dtype).itemsize

    # x block (i, k) is invariant along the class axis only when nk == 1.
    x_mode = pl.Buffered(1) if (nk == 1 and nc * nk >= 4) else None
    x_bufs = 1 if x_mode is not None else 2

    need = (x_bufs * tb * tk * in_bytes + 2 * tk * tc * in_bytes + 2 * tc * 4
            + 2 * tb * 4 + tb * tc * 4 + 2 * tb * 4)

    cost = pl.CostEstimate(
        flops=int(2 * B_pad * D_pad * C_pad),
        transcendentals=0,
        bytes_accessed=int((nc if nk > 1 else 1) * B_pad * D_pad * in_bytes
                           + nb * D_pad * C_pad * in_bytes + C_pad * 4 + B_pad * 4),
    )

    preds_pad = pl.pallas_call(
        functools.partial(_argmax_head_kernel, num_classes=C, tile_c=tc),
        out_shape=jax.ShapeDtypeStruct((B_pad, 1), jnp.int32),
        grid_spec=pltpu.PrefetchScalarGridSpec(
            num_scalar_prefetch=0,
            grid=(nb, nc, nk),
            in_specs=[
                _spec((tb, tk), lambda i, j, k: (i, k), x_mode),
                _spec((tk, tc), lambda i, j, k: (k, j)),
                _spec((1, tc), lambda i, j, k: (0, j)),
            ],
            out_specs=_spec((tb, 1), lambda i, j, k: (i, 0)),
            scratch_shapes=[
                pltpu.VMEM((tb, tc), jnp.float32),   # score accumulator over K
                pltpu.VMEM((tb, 1), jnp.float32),    # running max
                pltpu.VMEM((tb, 1), jnp.int32),      # running argmax
            ],
        ),
        compiler_params=pltpu.CompilerParams(
            dimension_semantics=("parallel", "arbitrary", "arbitrary"),
            vmem_limit_bytes=_vmem_limit_bytes(need),
        ),
        cost_estimate=cost,
    )(x, w, b2)

    return preds_pad[:B, 0]


if __name__ == "__main__":
    # Small, deterministic example consistent with the BaseHead forward contract:
    # features [batch_size, input_dim] -> logits [batch_size, num_classes]
    key = jax.random.PRNGKey(0)

    def make_case(k, B, D, C):
        kx, kw, kb = jax.random.split(k, 3)
        x = jax.random.normal(kx, (B, D), dtype=jnp.float32)
        bound = 1.0 / jnp.sqrt(jnp.float32(D))
        w = jax.random.uniform(kw, (D, C), minval=-bound, maxval=bound, dtype=jnp.float32)
        b = jax.random.uniform(kb, (C,), minval=-bound, maxval=bound, dtype=jnp.float32)
        return x, w, b

    def reference(x, w, b):
        xb = x.astype(jnp.bfloat16).astype(jnp.float32)
        wb = w.astype(jnp.bfloat16).astype(jnp.float32)
        return xb @ wb + b

    k1, k2 = jax.random.split(key)

    # Case 1: tiny, single-tile grid.
    B, D, C = 16, 32, 16
    x, w, b = make_case(k1, B, D, C)
    logits = jax.block_until_ready(base_head_forward(x, w, b))
    assert logits.shape == (B, C)
    ref = reference(x, w, b)
    assert jnp.allclose(logits, ref, atol=1e-3, rtol=1e-3), float(
        jnp.max(jnp.abs(logits - ref)))
    preds = jax.block_until_ready(base_head_predict(x, w, b))
    assert preds.shape == (B,)
    assert jnp.array_equal(preds, jnp.argmax(logits, axis=-1))

    # Case 2: odd sizes + forced multi-tile grid (exercises B/C/D padding, the K-axis
    # accumulator, grid-order selection and the padded-class masking in argmax).
    B, D, C = 24, 300, 130
    x, w, b = make_case(k2, B, D, C)
    logits = jax.block_until_ready(
        base_head_forward(x, w, b, tile_b=16, tile_c=128, tile_k=256))
    assert logits.shape == (B, C)
    ref = reference(x, w, b)
    assert jnp.allclose(logits, ref, atol=1e-3, rtol=1e-3), float(
        jnp.max(jnp.abs(logits - ref)))
    preds = jax.block_until_ready(
        base_head_predict(x, w, b, tile_b=16, tile_c=128, tile_k=256))
    assert preds.shape == (B,)
    assert jnp.array_equal(preds, jnp.argmax(logits, axis=-1))

    # Multi-label path (plain-JAX glue over the forward kernel).
    ml = jax.block_until_ready(base_head_predict(x, w, b, multilabel=True,
                                                 tile_b=16, tile_c=128, tile_k=256))
    assert ml.shape == (B, C)

    print("KERNEL_OK")
</pallas_src>

<mosaic_0001>
module attributes {stable_mosaic.version = 11 : i64} {
  func.func @_linear_head_kernel(%arg0: i32, %arg1: i32, %arg2: i32, %arg3: memref<16x256xbf16, #tpu.memory_space<vmem>>, %arg4: memref<256x128xbf16, #tpu.memory_space<vmem>>, %arg5: memref<1x128xf32, #tpu.memory_space<vmem>>, %arg6: memref<16x128xf32, #tpu.memory_space<vmem>>, %arg7: memref<16x128xf32, #tpu.memory_space<vmem>>) attributes {dimension_semantics = [#tpu.dimension_semantics<parallel>, #tpu.dimension_semantics<parallel>, #tpu.dimension_semantics<arbitrary>], iteration_bounds = array<i64: 1, 1, 1>, scalar_prefetch = 0 : i64, scratch_operands = 1 : i64, tpu.core_type = #tpu.core_type<tc>, window_params = [{transform_indices = @transform_0, window_bounds = array<i64: 16, 256>}, {transform_indices = @transform_1, window_bounds = array<i64: 256, 128>}, {transform_indices = @transform_2, window_bounds = array<i64: 1, 128>}, {transform_indices = @transform_3, window_bounds = array<i64: 16, 128>}]} {
    %c0_i32 = arith.constant 0 : i32
    %0 = arith.cmpi eq, %arg2, %c0_i32 : i32
    %1 = arith.extui %0 : i1 to i32
    %c0_i32_0 = arith.constant 0 : i32
    %2 = arith.cmpi ne, %1, %c0_i32_0 : i32
    scf.if %2 {
      %cst_10 = arith.constant 0.000000e+00 : f32
      %12 = vector.broadcast %cst_10 : f32 to vector<16x128xf32>
      %c0_11 = arith.constant 0 : index
      %c0_12 = arith.constant 0 : index
      %13 = vector.load %arg7[%c0_11, %c0_12] : memref<16x128xf32, #tpu.memory_space<vmem>>, vector<16x128xf32>
      tpu.vector_store %arg7[%c0_11, %c0_12], %12 {strides = array<i32>} : memref<16x128xf32, #tpu.memory_space<vmem>>, vector<16x128xf32>,
    } else {
    }
    %c0 = arith.constant 0 : index
    %c0_1 = arith.constant 0 : index
    %3 = vector.load %arg7[%c0, %c0_1] : memref<16x128xf32, #tpu.memory_space<vmem>>, vector<16x128xf32>
    %c0_2 = arith.constant 0 : index
    %c0_3 = arith.constant 0 : index
    %4 = vector.load %arg3[%c0_2, %c0_3] : memref<16x256xbf16, #tpu.memory_space<vmem>>, vector<16x256xbf16>
    %c0_4 = arith.constant 0 : index
    %c0_5 = arith.constant 0 : index
    %5 = vector.load %arg4[%c0_4, %c0_5] : memref<256x128xbf16, #tpu.memory_space<vmem>>, vector<256x128xbf16>
    %cst = arith.constant dense<0.000000e+00> : vector<16x128xf32>
    %6 = tpu.matmul %4, %5, %cst {dimension_numbers = #tpu.dot_dimension_numbers<[1], [0], [0], [1], [0, 0, 1, 1], [], []>} : vector<16x256xbf16>, vector<256x128xbf16>, vector<16x128xf32> -> vector<16x128xf32>
    %7 = arith.addf %3, %6 : vector<16x128xf32>
    %c0_6 = arith.constant 0 : index
    %c0_7 = arith.constant 0 : index
    %8 = vector.load %arg7[%c0_6, %c0_7] : memref<16x128xf32, #tpu.memory_space<vmem>>, vector<16x128xf32>
    tpu.vector_store %arg7[%c0_6, %c0_7], %7 {strides = array<i32>} : memref<16x128xf32, #tpu.memory_space<vmem>>, vector<16x128xf32>,
    %c0_i32_8 = arith.constant 0 : i32
    %9 = arith.cmpi eq, %arg2, %c0_i32_8 : i32
    %10 = arith.extui %9 : i1 to i32
    %c0_i32_9 = arith.constant 0 : i32
    %11 = arith.cmpi ne, %10, %c0_i32_9 : i32
    scf.if %11 {
      %c0_10 = arith.constant 0 : index
      %c0_11 = arith.constant 0 : index
      %12 = vector.load %arg7[%c0_10, %c0_11] : memref<16x128xf32, #tpu.memory_space<vmem>>, vector<16x128xf32>
      %c0_12 = arith.constant 0 : index
      %c0_13 = arith.constant 0 : index
      %13 = vector.load %arg5[%c0_12, %c0_13] : memref<1x128xf32, #tpu.memory_space<vmem>>, vector<1x128xf32>
      %14 = vector.broadcast %13 : vector<1x128xf32> to vector<16x128xf32>
      %15 = arith.addf %12, %14 : vector<16x128xf32>
      %c0_14 = arith.constant 0 : index
      %c0_15 = arith.constant 0 : index
      %16 = vector.load %arg6[%c0_14, %c0_15] : memref<16x128xf32, #tpu.memory_space<vmem>>, vector<16x128xf32>
      tpu.vector_store %arg6[%c0_14, %c0_15], %15 {strides = array<i32>} : memref<16x128xf32, #tpu.memory_space<vmem>>, vector<16x128xf32>,
    } else {
    }
    return
  }
  func.func @transform_0(%arg0: i32, %arg1: i32, %arg2: i32) -> (i32, i32) {
    %c0_i32 = arith.constant 0 : i32
    return %arg1, %arg2 : i32, i32
  }
  func.func @transform_1(%arg0: i32, %arg1: i32, %arg2: i32) -> (i32, i32) {
    %c0_i32 = arith.constant 0 : i32
    return %arg2, %arg0 : i32, i32
  }
  func.func @transform_2(%arg0: i32, %arg1: i32, %arg2: i32) -> (i32, i32) {
    %c0_i32 = arith.constant 0 : i32
    %c0_i32_0 = arith.constant 0 : i32
    return %c0_i32, %arg0 : i32, i32
  }
  func.func @transform_3(%arg0: i32, %arg1: i32, %arg2: i32) -> (i32, i32) {
    %c0_i32 = arith.constant 0 : i32
    return %arg1, %arg0 : i32, i32
  }
}

</mosaic_0001>

<llo_original>
// kernel: base_head_forward.1
$region0: #{base_head_forward.1}
  #allocation0 [shape = 'u32[]', space=smem, size = 0x4, offset = 0x4, fixed_abs, tag = 'smem constant byte address 0x4 - core index']
  #allocation1 [shape = 'u32[144,128]{1,0:T(1,128)}', space=vmem, size = 0x12000, scoped, tag = 'internal scratch']
  #allocation2 [shape = 'f32[16,128]{1,0:T(8,128)}', space=vmem, size = 0x2000, scoped, tag = 'scratch operand']
  %s0 = inlined_call_operand.vmem [shape: bf16[16,256], index: 0, kind: input, shape index: {}]
  %s1 = inlined_call_operand.vmem [shape: bf16[256,128], index: 1, kind: input, shape index: {}]
  %s2 = inlined_call_operand.vmem [shape: f32[1,128], index: 2, kind: input, shape index: {}]
  %s3 = inlined_call_operand.hbm [shape: f32[16,128], index: 3, kind: output, shape index: {}]
  %s4 = sld [smem:[#allocation0]]
  $region30: #{base_head_forward.1} parent=0
    _
  %s6 = ssub.s32 1, %s4
  %s7 = scalar_select 0, %s6, %s4
  $region1: #{base_head_forward.1} parent=0
    #allocation3 [shape = 'u8[8192]{0}', space=vmem, size = 0x2000, scoped, tag = 'output window, operand 0, single buffered']
    #allocation4 [shape = 's32[1]{0}', space=sflag, size = 0x4, scoped, tag = 'scoped memory for base_head_forward.1']
    %8 = vsyncpa [#allocation4], 0
    // Predicated region
    $region2: #{base_head_forward.1} parent=1 // pred_check
      _
    $region3: #{base_head_forward.1} parent=1 // pred_check_branch
      %10 = sbr.rel (0) target = $region5
    $region4: #{base_head_forward.1} parent=1 // pred_region
      _
    $region5: #{base_head_forward.1} parent=1 // pred_fallthru
      _
    // Predicated region
    $region6: #{base_head_forward.1} parent=1 // pred_check
      _
    $region7: #{base_head_forward.1} parent=1 // pred_check_branch
      %12 = sbr.rel (0) target = $region9
    $region8: #{base_head_forward.1} parent=1 // pred_region
      _
    $region9: #{base_head_forward.1} parent=1 // pred_fallthru
      _
    // Predicated region
    $region10: #{base_head_forward.1} parent=1 // pred_check
      _
    $region11: #{base_head_forward.1} parent=1 // pred_check_branch
      %14 = sbr.rel (0) target = $region13
    $region12: #{base_head_forward.1} parent=1 // pred_region
      _
    $region13: #{base_head_forward.1} parent=1 // pred_fallthru
      _
    %p16 = scmp.eq.s32.totalorder 0, 0
    // Predicated region
    $region14: #{base_head_forward.1} parent=1 // pred_check
      %p17 = pneg %p16
    $region15: #{base_head_forward.1} parent=1 // pred_check_branch
      %19 = sbr.rel (%p17) target = $region17
    $region16: #{base_head_forward.1} parent=1 // pred_region
      %20 = vst [vmem:[#allocation2] sm:$0xff] 0.0
      %21 = vst [vmem:[#allocation2 + $0x8] sm:$0xff] 0.0
    $region17: #{base_head_forward.1} parent=1 // pred_fallthru
      _
    %v22 = vld [vmem:[#allocation2] sm:$0xff]
    %v23 = vld [vmem:[#allocation2 + $0x8] sm:$0xff]
    %v24 = vld [vmem:[%s0] sm:$0xff]
    %v25 = vld [vmem:[%s0 + $0x8] sm:$0xff]
    %v26 = vld [vmem:[%s1] sm:$0xf]
    %v27 = vld [vmem:[%s1 + $0x4] sm:$0xf]
    %v28 = vld [vmem:[%s1 + $0x8] sm:$0xf]
    %v29 = vld [vmem:[%s1 + $0xc] sm:$0xf]
    %v30 = vld [vmem:[%s1 + $0x10] sm:$0xf]
    %v31 = vld [vmem:[%s1 + $0x14] sm:$0xf]
    %v32 = vld [vmem:[%s1 + $0x18] sm:$0xf]
    %v33 = vld [vmem:[%s1 + $0x1c] sm:$0xf]
    %v34 = vld [vmem:[%s1 + $0x20] sm:$0xf]
    %v35 = vld [vmem:[%s1 + $0x24] sm:$0xf]
    %v36 = vld [vmem:[%s1 + $0x28] sm:$0xf]
    %v37 = vld [vmem:[%s1 + $0x2c] sm:$0xf]
    %v38 = vld [vmem:[%s1 + $0x30] sm:$0xf]
    %v39 = vld [vmem:[%s1 + $0x34] sm:$0xf]
    %v40 = vld [vmem:[%s1 + $0x38] sm:$0xf]
    %v41 = vld [vmem:[%s1 + $0x3c] sm:$0xf]
    %v42 = vld [vmem:[%s1 + $0x40] sm:$0xf]
    %v43 = vld [vmem:[%s1 + $0x44] sm:$0xf]
    %v44 = vld [vmem:[%s1 + $0x48] sm:$0xf]
    %v45 = vld [vmem:[%s1 + $0x4c] sm:$0xf]
    %v46 = vld [vmem:[%s1 + $0x50] sm:$0xf]
    %v47 = vld [vmem:[%s1 + $0x54] sm:$0xf]
    %v48 = vld [vmem:[%s1 + $0x58] sm:$0xf]
    %v49 = vld [vmem:[%s1 + $0x5c] sm:$0xf]
    %v50 = vld [vmem:[%s1 + $0x60] sm:$0xf]
    %v51 = vld [vmem:[%s1 + $0x64] sm:$0xf]
    %v52 = vld [vmem:[%s1 + $0x68] sm:$0xf]
    %v53 = vld [vmem:[%s1 + $0x6c] sm:$0xf]
    %v54 = vld [vmem:[%s1 + $0x70] sm:$0xf]
    %v55 = vld [vmem:[%s1 + $0x74] sm:$0xf]
    %v56 = vld [vmem:[%s1 + $0x78] sm:$0xf]
    %v57 = vld [vmem:[%s1 + $0x7c] sm:$0xf]
    %v60 = vunpack.c.l.b16 %v24
    %v61 = vunpack.c.h.b16 %v24
    %v62 = vunpack.c.l.b16 %v25
    %v63 = vunpack.c.h.b16 %v25
    %v64 = vpack.c.b16 %v62, %v60
    %v65 = vpack.c.b16 %v63, %v61
    %v100 = vunpack.c.l.b16 %v26
    %v101 = vunpack.c.l.b16 %v27
    %v102 = vunpack.c.l.b16 %v28
    %v103 = vunpack.c.l.b16 %v29
    %v104 = vunpack.c.l.b16 %v30
    %v105 = vunpack.c.l.b16 %v31
    %v106 = vunpack.c.l.b16 %v32
    %v107 = vunpack.c.l.b16 %v33
    %v108 = vunpack.c.l.b16 %v34
    %v109 = vunpack.c.l.b16 %v35
    %v110 = vunpack.c.l.b16 %v36
    %v111 = vunpack.c.l.b16 %v37
    %v112 = vunpack.c.l.b16 %v38
    %v113 = vunpack.c.l.b16 %v39
    %v114 = vunpack.c.l.b16 %v40
    %v115 = vunpack.c.l.b16 %v41
    %v116 = vunpack.c.l.b16 %v42
    %v117 = vunpack.c.l.b16 %v43
    %v118 = vunpack.c.l.b16 %v44
    %v119 = vunpack.c.l.b16 %v45
    %v120 = vunpack.c.l.b16 %v46
    %v121 = vunpack.c.l.b16 %v47
    %v122 = vunpack.c.l.b16 %v48
    %v123 = vunpack.c.l.b16 %v49
    %v124 = vunpack.c.l.b16 %v50
    %v125 = vunpack.c.l.b16 %v51
    %v126 = vunpack.c.l.b16 %v52
    %v127 = vunpack.c.l.b16 %v53
    %v128 = vunpack.c.l.b16 %v54
    %v129 = vunpack.c.l.b16 %v55
    %v130 = vunpack.c.l.b16 %v56
    %v131 = vunpack.c.l.b16 %v57
    %v132 = vpack.c.b16 %v101, %v100
    %v133 = vpack.c.b16 %v103, %v102
    %v134 = vpack.c.b16 %v105, %v104
    %v135 = vpack.c.b16 %v107, %v106
    %v136 = vpack.c.b16 %v109, %v108
    %v137 = vpack.c.b16 %v111, %v110
    %v138 = vpack.c.b16 %v113, %v112
    %v139 = vpack.c.b16 %v115, %v114
    %v140 = vpack.c.b16 %v117, %v116
    %v141 = vpack.c.b16 %v119, %v118
    %v142 = vpack.c.b16 %v121, %v120
    %v143 = vpack.c.b16 %v123, %v122
    %v144 = vpack.c.b16 %v125, %v124
    %v145 = vpack.c.b16 %v127, %v126
    %v146 = vpack.c.b16 %v129, %v128
    %v147 = vpack.c.b16 %v131, %v130
    %164 = vmatprep.subr.bf16.mxu0 0
    %165 = vmatpush1.bf16.msra.mxu0 %v132
    %166 = vmatprep.subr.bf16.mxu0 0
    %167 = vmatpush1.bf16.msra.mxu0 %v133
    %168 = vmatprep.subr.bf16.mxu0 0
    %169 = vmatpush1.bf16.msra.mxu0 %v134
    %170 = vmatprep.subr.bf16.mxu0 0
    %171 = vmatpush1.bf16.msra.mxu0 %v135
    %172 = vmatprep.subr.bf16.mxu0 0
    %173 = vmatpush1.bf16.msra.mxu0 %v136
    %174 = vmatprep.subr.bf16.mxu0 0
    %175 = vmatpush1.bf16.msra.mxu0 %v137
    %176 = vmatprep.subr.bf16.mxu0 0
    %177 = vmatpush1.bf16.msra.mxu0 %v138
    %178 = vmatprep.subr.bf16.mxu0 0
    %179 = vmatpush1.bf16.msra.mxu0 %v139
    %180 = vmatprep.subr.bf16.mxu0 0
    %181 = vmatpush1.bf16.msra.mxu0 %v140
    %182 = vmatprep.subr.bf16.mxu0 0
    %183 = vmatpush1.bf16.msra.mxu0 %v141
    %184 = vmatprep.subr.bf16.mxu0 0
    %185 = vmatpush1.bf16.msra.mxu0 %v142
    %186 = vmatprep.subr.bf16.mxu0 0
    %187 = vmatpush1.bf16.msra.mxu0 %v143
    %188 = vmatprep.subr.bf16.mxu0 0
    %189 = vmatpush1.bf16.msra.mxu0 %v144
    %190 = vmatprep.subr.bf16.mxu0 0
    %191 = vmatpush1.bf16.msra.mxu0 %v145
    %192 = vmatprep.subr.bf16.mxu0 0
    %193 = vmatpush1.bf16.msra.mxu0 %v146
    %194 = vmatprep.subr.bf16.mxu0 0
    %195 = vmatpush1.bf16.msra.mxu0 %v147
    %196 = vmatprep.mubr.bf16.mxu0 %v65
    %197 = vmatmul.mubr.bf16.gmra.mrb[0].mxu0 %v64
    %v198 = vpop.f32.mrb[0].mxu0
    %v199 = vadd.f32 0.0, %v198
    %v200 = vpop.f32.mrb[0].mxu0
    %v201 = vpop.f32.mrb[0].mxu0
    %v202 = vadd.f32 0.0, %v201
    %v203 = vpop.f32.mrb[0].mxu0
    %204 = vdwg.mxu0
    %v205 = vadd.f32 %v22, %v199
    %v206 = vadd.f32 %v23, %v202
    %207 = vst [vmem:[#allocation2] sm:$0xff] %v205
    %208 = vst [vmem:[#allocation2 + $0x8] sm:$0xff] %v206
    // Predicated region
    $region18: #{base_head_forward.1} parent=1 // pred_check
      %p209 = pneg %p16
    $region19: #{base_head_forward.1} parent=1 // pred_check_branch
      %211 = sbr.rel (%p209) target = $region21
    $region20: #{base_head_forward.1} parent=1 // pred_region
      %v212 = vld [vmem:[#allocation2] sm:$0xff]
      %v213 = vld [vmem:[#allocation2 + $0x8] sm:$0xff]
      %v214 = vld [vmem:[%s2] sm:$0x1]
      %v216 = vlaneseq
      %v217 = vshrl.u32 %v216, 7
      %v218 = vsub.s32 0, %v217
      %v219 = vrot.slane %v214, %v218
      %v221 = vadd.f32 %v212, %v219
      %v222 = vadd.f32 %v213, %v219
      %223 = vst [vmem:[#allocation3] sm:$0xff] %v221
      %224 = vst [vmem:[#allocation3 + $0x8] sm:$0xff] %v222
    $region21: #{base_head_forward.1} parent=1 // pred_fallthru
      _
    // Predicated region
    $region22: #{base_head_forward.1} parent=1 // pred_check
      _
    $region23: #{base_head_forward.1} parent=1 // pred_check_branch
      %226 = sbr.rel (0) target = $region25
    $region24: #{base_head_forward.1} parent=1 // pred_region
      %s228 = ssub.s32 256, 256
      %229 = vsyncadd [#allocation4], %s228
      %s230 = sshll.u32 [#allocation3], 4
      %s231 = int_to_ptr.vmem [resolvable:$true] %s230
      %236 = dma.vmem_to_hbm [thread:$0]  %s231, 256, %s3, [#allocation4], 128, 128, 8
    $region25: #{base_head_forward.1} parent=1 // pred_fallthru
      _
    // Predicated region
    $region26: #{base_head_forward.1} parent=1 // pred_check
      _
    $region27: #{base_head_forward.1} parent=1 // pred_check_branch
      %238 = sbr.rel (0) target = $region29
    $region28: #{base_head_forward.1} parent=1 // pred_region
      %239 = dma.done [#allocation4], 256
    $region29: #{base_head_forward.1} parent=1 // pred_fallthru
      _
    %240 = vsyncpa [#allocation4], 1

</llo_original>
